<compile_context>
chip_gen: v7x
topology: tpu7x:2x2x1
jax: 0.10.0
libtpu: 0.0.40
codegen_flags: <defaults>
</compile_context>

<pallas_src>
import functools

import jax
import jax.numpy as jnp
from jax import lax
from jax.experimental import pallas as pl
from jax.experimental.pallas import tpu as pltpu


def _round_up(v, mult):
    return (v + mult - 1) // mult * mult


def _ksvm_kernel(kernel_type, kpar, low_precision, *refs):
    """One (m-tile, n-tile) grid step.  acc_ref persists across the n axis."""
    if kernel_type == "rbf":
        xtr_ref, x_ref, beta_ref, xtr_sq_ref, x_sq_ref, b_ref, out_ref, acc_ref = refs
    else:  # polynomial / poly
        xtr_ref, x_ref, beta_ref, b_ref, out_ref, acc_ref = refs

    k_idx = pl.program_id(1)

    @pl.when(k_idx == 0)
    def _():
        acc_ref[...] = jnp.zeros_like(acc_ref)

    # Cross inner products on the MXU; contract the last dim of both operands
    # directly so no explicit transpose of the x tile is materialized.
    cross = lax.dot_general(
        xtr_ref[...], x_ref[...],
        dimension_numbers=(((1,), (1,)), ((), ())),
        preferred_element_type=jnp.float32)            # (tn, tm) f32

    if kernel_type == "rbf":
        # ||a-b||^2 = ||a||^2 + ||b||^2 - 2 a.b, clamped at 0 (matches
        # l2distance(..)**2 in the reference).  Norms are f32 and precomputed
        # in the wrapper (hoisted out of the reduction loop).
        d2 = jnp.maximum(xtr_sq_ref[...] + x_sq_ref[...] - 2.0 * cross, 0.0)
        arg = -kpar * d2
        if low_precision:
            # bf16 exp: ~2x EUP throughput on v6e/v7x and half the K tile.
            arg = arg.astype(jnp.bfloat16)
        K = jnp.exp(arg)
    else:
        base = cross + 1.0
        if float(kpar).is_integer() and 0 <= int(kpar) <= 64:
            # Integer degree (the common SVM case): exponentiation by squaring
            # on the VPU instead of log+exp on the single EUP slot.
            p = int(kpar)
            K = jnp.ones_like(base)
            sq = base
            while p > 0:
                if p & 1:
                    K = K * sq
                p >>= 1
                if p:
                    sq = sq * sq
        else:
            # Non-integer degree: jnp.power matches torch.pow semantics
            # (NaN for negative base), same as the PyTorch reference.
            K = jnp.power(base, kpar)

    # beta is a (1, tn) row on both paths: a 1-row MXU matvec rides as free
    # filler under the EUP-bound exp (rbf) / VPU-bound power chain (poly).
    acc_ref[...] += jnp.dot(beta_ref[...].astype(K.dtype), K,
                            preferred_element_type=jnp.float32)   # (1, tm)

    @pl.when(k_idx == pl.num_programs(1) - 1)
    def _():
        out_ref[...] = acc_ref[...] + b_ref[0]


def _linear_kernel(x_ref, w_ref, b_ref, out_ref):
    # out tile = w @ x_tile.T + b  (contract the feature axis of both operands).
    out_ref[...] = lax.dot_general(
        w_ref[...], x_ref[...],
        dimension_numbers=(((1,), (1,)), ((), ())),
        preferred_element_type=jnp.float32) + b_ref[0]


def kernelized_svm_forward(xTr, x, beta, b, *, kernel_type="rbf", kpar=0.05,
                           tm=1024, tn=512, matmul_dtype=jnp.bfloat16):
    """Pallas equivalent of KernelizedSVM(dim=n, kernel_type, kpar).forward(xTr, x)."""
    assert kernel_type in ("linear", "polynomial", "poly", "rbf"), (
        f"Kernel type {kernel_type} not known.")
    assert xTr.shape[1] == x.shape[1], "Input dimensions do not match"

    xTr = jnp.asarray(xTr, jnp.float32)
    x = jnp.asarray(x, jnp.float32)
    beta = jnp.asarray(beta, jnp.float32).reshape(-1)
    b_arr = jnp.asarray(b, jnp.float32).reshape(1)

    n, d = xTr.shape
    m = x.shape[0]

    # Lane-dense padding (exact: zero feature columns change neither dot
    # products nor norms, zero beta rows contribute nothing, padded output
    # columns are sliced off after the call).
    d_pad = _round_up(d, 128)
    m_pad128 = _round_up(m, 128)
    tm = min(tm, m_pad128)
    if m_pad128 >= 256:
        # Guarantee >= 2 m-tiles so ("parallel", ...) can shard the query axis
        # across v7x's 2 TensorCores.
        tm = min(tm, (m_pad128 // 2) // 128 * 128)
    m_pad = _round_up(m, tm)

    x_p = jnp.pad(x, ((0, m_pad - m), (0, d_pad - d)))

    if kernel_type == "linear":
        # Algebraic short-circuit: out = (beta @ xTr) @ x.T + b.  The (n, m)
        # kernel matrix is never formed; the remaining work is O((n+m)*d).
        w = jnp.dot(beta, xTr, precision=lax.Precision.HIGHEST)   # (d,)
        w_p = jnp.pad(w, (0, d_pad - d)).reshape(1, d_pad)
        out = pl.pallas_call(
            _linear_kernel,
            out_shape=jax.ShapeDtypeStruct((1, m_pad), jnp.float32),
            grid_spec=pltpu.PrefetchScalarGridSpec(
                num_scalar_prefetch=0,
                grid=(m_pad // tm,),
                in_specs=[
                    pl.BlockSpec((tm, d_pad), lambda i: (i, 0)),   # x tile
                    pl.BlockSpec((1, d_pad), lambda i: (0, 0)),    # w row
                    pl.BlockSpec(memory_space=pltpu.SMEM),         # b scalar
                ],
                out_specs=pl.BlockSpec((1, tm), lambda i: (0, i)),
            ),
            compiler_params=pltpu.CompilerParams(
                dimension_semantics=("parallel",)),
        )(x_p, w_p, b_arr)
        return out[0, :m]

    tn = min(tn, _round_up(n, 128))
    n_pad = _round_up(n, tn)

    op_dtype = jnp.dtype(matmul_dtype)
    low_precision = op_dtype != jnp.dtype(jnp.float32)

    xtr_p = jnp.pad(xTr, ((0, n_pad - n), (0, d_pad - d))).astype(op_dtype)
    x_op = x_p.astype(op_dtype)
    beta_p = jnp.pad(beta, (0, n_pad - n)).reshape(1, n_pad)    # (1, n_pad) f32

    in_specs = [
        pl.BlockSpec((tn, d_pad), lambda i, k: (k, 0)),   # xTr tile
        pl.BlockSpec((tm, d_pad), lambda i, k: (i, 0)),   # x tile
        pl.BlockSpec((1, tn), lambda i, k: (0, k)),       # beta row tile
    ]
    args = [xtr_p, x_op, beta_p]

    if kernel_type == "rbf":
        # Row norms hoisted out of the in-kernel reduction loop, kept in f32.
        xtr_sq = jnp.pad(jnp.sum(xTr * xTr, axis=1),
                         (0, n_pad - n)).reshape(n_pad, 1)
        x_sq = jnp.pad(jnp.sum(x * x, axis=1),
                       (0, m_pad - m)).reshape(1, m_pad)
        in_specs += [
            pl.BlockSpec((tn, 1), lambda i, k: (k, 0)),   # ||xTr||^2 tile
            pl.BlockSpec((1, tm), lambda i, k: (0, i)),   # ||x||^2 tile
        ]
        args += [xtr_sq, x_sq]

    in_specs.append(pl.BlockSpec(memory_space=pltpu.SMEM))    # b scalar
    args.append(b_arr)

    out = pl.pallas_call(
        functools.partial(_ksvm_kernel, kernel_type, float(kpar),
                          bool(low_precision)),
        out_shape=jax.ShapeDtypeStruct((1, m_pad), jnp.float32),
        grid_spec=pltpu.PrefetchScalarGridSpec(
            num_scalar_prefetch=0,
            grid=(m_pad // tm, n_pad // tn),
            in_specs=in_specs,
            # FIX: the output is (1, m_pad); tile i addresses COLUMN block i.
            out_specs=pl.BlockSpec((1, tm), lambda i, k: (0, i)),
            scratch_shapes=[pltpu.VMEM((1, tm), jnp.float32)],
        ),
        compiler_params=pltpu.CompilerParams(
            dimension_semantics=("parallel", "arbitrary")),
    )(*args)

    return out[0, :m]


def _reference(xTr, x, beta, b, kernel_type, kpar):
    # Pure-JAX reference of computeK(...) + beta.T @ K + b (HIGHEST precision
    # so the reference itself is not the source of error on real TPUs).
    hp = lax.Precision.HIGHEST
    if kernel_type == "linear":
        K = jnp.matmul(xTr, x.T, precision=hp)
    elif kernel_type in ("polynomial", "poly"):
        K = (jnp.matmul(xTr, x.T, precision=hp) + 1.0) ** kpar
    else:
        d2 = jnp.maximum(
            jnp.sum(xTr * xTr, 1)[:, None]
            + jnp.sum(x * x, 1)[None, :]
            - 2.0 * jnp.matmul(xTr, x.T, precision=hp),
            0.0)
        K = jnp.exp(-kpar * d2)
    return jnp.matmul(beta, K, precision=hp) + b


def _assert_close(out, ref, rel):
    err = float(jnp.max(jnp.abs(out - ref)))
    scale = 1.0 + float(jnp.max(jnp.abs(ref)))
    assert err <= rel * scale, f"max abs err {err} > {rel} * {scale}"


if __name__ == "__main__":
    key = jax.random.PRNGKey(0)
    k1, k2, k3, k4 = jax.random.split(key, 4)

    # Small deterministic example: n=16 training vectors, m=8 queries, d=32.
    n, m, d = 16, 8, 32
    xTr = jax.random.normal(k1, (n, d), dtype=jnp.float32)
    x = jax.random.normal(k2, (m, d), dtype=jnp.float32)
    beta = jax.random.normal(k3, (n,), dtype=jnp.float32)   # nn.Parameter(torch.randn(dim))
    b = jax.random.normal(k4, (1,), dtype=jnp.float32)      # nn.Parameter(torch.randn(1))

    # RBF (the notebook's primary usage): default bf16 operand path (loose
    # tolerance) and strict f32 fallback path (tight tolerance).
    ref_rbf = _reference(xTr, x, beta, b[0], "rbf", 0.05)
    out_rbf = jax.block_until_ready(
        kernelized_svm_forward(xTr, x, beta, b, kernel_type="rbf", kpar=0.05))
    assert out_rbf.shape == (m,)
    _assert_close(out_rbf, ref_rbf, 5e-2)

    out_rbf_f32 = jax.block_until_ready(
        kernelized_svm_forward(xTr, x, beta, b, kernel_type="rbf", kpar=0.05,
                               matmul_dtype=jnp.float32))
    _assert_close(out_rbf_f32, ref_rbf, 1e-3)

    # Linear: algebraic short-circuit + small Pallas matvec kernel.
    out_lin = jax.block_until_ready(
        kernelized_svm_forward(xTr, x, beta, b, kernel_type="linear", kpar=0.0))
    _assert_close(out_lin, _reference(xTr, x, beta, b[0], "linear", 0.0), 1e-3)

    # Polynomial (integer degree -> exponentiation by squaring), strict f32
    # operands (large powers are precision-sensitive; bf16 also works but with
    # a looser tolerance).
    out_poly = jax.block_until_ready(
        kernelized_svm_forward(xTr, x, beta, b, kernel_type="poly", kpar=3,
                               matmul_dtype=jnp.float32))
    _assert_close(out_poly, _reference(xTr, x, beta, b[0], "poly", 3), 1e-3)

    # Multi-tile grid smoke test (2 m-tiles x 3 n-tiles with tm=tn=128):
    # exercises the fixed output index_map, the padding, and the f32
    # accumulator across several n steps.
    n2, m2, d2_ = 300, 200, 50
    xTr2 = jax.random.normal(k1, (n2, d2_), dtype=jnp.float32)
    x2 = jax.random.normal(k2, (m2, d2_), dtype=jnp.float32)
    beta2 = jax.random.normal(k3, (n2,), dtype=jnp.float32)
    ref2 = _reference(xTr2, x2, beta2, b[0], "rbf", 0.05)

    out2_f32 = jax.block_until_ready(
        kernelized_svm_forward(xTr2, x2, beta2, b, kernel_type="rbf", kpar=0.05,
                               tm=128, tn=128, matmul_dtype=jnp.float32))
    assert out2_f32.shape == (m2,)
    _assert_close(out2_f32, ref2, 1e-3)

    out2_bf16 = jax.block_until_ready(
        kernelized_svm_forward(xTr2, x2, beta2, b, kernel_type="rbf", kpar=0.05,
                               tm=128, tn=128))
    _assert_close(out2_bf16, ref2, 5e-2)

    # Multi-tile linear short-circuit (2 m-tiles).
    out2_lin = jax.block_until_ready(
        kernelized_svm_forward(xTr2, x2, beta2, b, kernel_type="linear", tm=128))
    _assert_close(out2_lin, _reference(xTr2, x2, beta2, b[0], "linear", 0.0), 1e-3)

    print("KERNEL_OK")
</pallas_src>

<mosaic_0001>
module attributes {stable_mosaic.version = 11 : i64} {
  func.func @_ksvm_kernel(%arg0: i32, %arg1: i32, %arg2: memref<128x128xbf16, #tpu.memory_space<vmem>>, %arg3: memref<128x128xbf16, #tpu.memory_space<vmem>>, %arg4: memref<1x128xf32, #tpu.memory_space<vmem>>, %arg5: memref<128x1xf32, #tpu.memory_space<vmem>>, %arg6: memref<1x128xf32, #tpu.memory_space<vmem>>, %arg7: memref<1xf32, #tpu.memory_space<smem>>, %arg8: memref<1x128xf32, #tpu.memory_space<vmem>>, %arg9: memref<1x128xf32, #tpu.memory_space<vmem>>) attributes {dimension_semantics = [#tpu.dimension_semantics<parallel>, #tpu.dimension_semantics<arbitrary>], iteration_bounds = array<i64: 1, 1>, scalar_prefetch = 0 : i64, scratch_operands = 1 : i64, tpu.core_type = #tpu.core_type<tc>, window_params = [{transform_indices = @transform_0, window_bounds = array<i64: 128, 128>}, {transform_indices = @transform_1, window_bounds = array<i64: 128, 128>}, {transform_indices = @transform_2, window_bounds = array<i64: 1, 128>}, {transform_indices = @transform_3, window_bounds = array<i64: 128, 1>}, {transform_indices = @transform_4, window_bounds = array<i64: 1, 128>}, {transform_indices = @transform_5, window_bounds = array<i64: 1>}, {transform_indices = @transform_6, window_bounds = array<i64: 1, 128>}]} {
    %c0_i32 = arith.constant 0 : i32
    %0 = arith.cmpi eq, %arg1, %c0_i32 : i32
    %1 = arith.extui %0 : i1 to i32
    %c0_i32_0 = arith.constant 0 : i32
    %2 = arith.cmpi ne, %1, %c0_i32_0 : i32
    scf.if %2 {
      %cst_20 = arith.constant 0.000000e+00 : f32
      %29 = vector.broadcast %cst_20 : f32 to vector<1x128xf32>
      %c0_21 = arith.constant 0 : index
      %c0_22 = arith.constant 0 : index
      %30 = vector.load %arg9[%c0_21, %c0_22] : memref<1x128xf32, #tpu.memory_space<vmem>>, vector<1x128xf32>
      tpu.vector_store %arg9[%c0_21, %c0_22], %29 {strides = array<i32>} : memref<1x128xf32, #tpu.memory_space<vmem>>, vector<1x128xf32>,
    } else {
    }
    %c0 = arith.constant 0 : index
    %c0_1 = arith.constant 0 : index
    %3 = vector.load %arg2[%c0, %c0_1] : memref<128x128xbf16, #tpu.memory_space<vmem>>, vector<128x128xbf16>
    %c0_2 = arith.constant 0 : index
    %c0_3 = arith.constant 0 : index
    %4 = vector.load %arg3[%c0_2, %c0_3] : memref<128x128xbf16, #tpu.memory_space<vmem>>, vector<128x128xbf16>
    %cst = arith.constant dense<0.000000e+00> : vector<128x128xf32>
    %5 = tpu.matmul %3, %4, %cst {dimension_numbers = #tpu.dot_dimension_numbers<[1], [1], [0], [0], [0, 0, 1, 0], [], []>} : vector<128x128xbf16>, vector<128x128xbf16>, vector<128x128xf32> -> vector<128x128xf32>
    %c0_4 = arith.constant 0 : index
    %c0_5 = arith.constant 0 : index
    %6 = vector.load %arg5[%c0_4, %c0_5] : memref<128x1xf32, #tpu.memory_space<vmem>>, vector<128x1xf32>
    %c0_6 = arith.constant 0 : index
    %c0_7 = arith.constant 0 : index
    %7 = vector.load %arg6[%c0_6, %c0_7] : memref<1x128xf32, #tpu.memory_space<vmem>>, vector<1x128xf32>
    %8 = vector.broadcast %6 : vector<128x1xf32> to vector<128x128xf32>
    %9 = vector.broadcast %7 : vector<1x128xf32> to vector<128x128xf32>
    %10 = arith.addf %8, %9 : vector<128x128xf32>
    %cst_8 = arith.constant 2.000000e+00 : f32
    %11 = vector.broadcast %cst_8 : f32 to vector<128x128xf32>
    %12 = arith.mulf %11, %5 : vector<128x128xf32>
    %13 = arith.subf %10, %12 : vector<128x128xf32>
    %cst_9 = arith.constant 0.000000e+00 : f32
    %14 = vector.broadcast %cst_9 : f32 to vector<128x128xf32>
    %15 = arith.maximumf %13, %14 : vector<128x128xf32>
    %cst_10 = arith.constant -5.000000e-02 : f32
    %16 = vector.broadcast %cst_10 : f32 to vector<128x128xf32>
    %17 = arith.mulf %16, %15 : vector<128x128xf32>
    %18 = arith.truncf %17 : vector<128x128xf32> to vector<128x128xbf16>
    %19 = math.exp %18 : vector<128x128xbf16>
    %c0_11 = arith.constant 0 : index
    %c0_12 = arith.constant 0 : index
    %20 = vector.load %arg9[%c0_11, %c0_12] : memref<1x128xf32, #tpu.memory_space<vmem>>, vector<1x128xf32>
    %c0_13 = arith.constant 0 : index
    %c0_14 = arith.constant 0 : index
    %21 = vector.load %arg4[%c0_13, %c0_14] : memref<1x128xf32, #tpu.memory_space<vmem>>, vector<1x128xf32>
    %22 = arith.truncf %21 : vector<1x128xf32> to vector<1x128xbf16>
    %cst_15 = arith.constant dense<0.000000e+00> : vector<1x128xf32>
    %23 = tpu.matmul %22, %19, %cst_15 {dimension_numbers = #tpu.dot_dimension_numbers<[1], [0], [0], [1], [0, 0, 1, 1], [], []>} : vector<1x128xbf16>, vector<128x128xbf16>, vector<1x128xf32> -> vector<1x128xf32>
    %24 = arith.addf %20, %23 : vector<1x128xf32>
    %c0_16 = arith.constant 0 : index
    %c0_17 = arith.constant 0 : index
    %25 = vector.load %arg9[%c0_16, %c0_17] : memref<1x128xf32, #tpu.memory_space<vmem>>, vector<1x128xf32>
    tpu.vector_store %arg9[%c0_16, %c0_17], %24 {strides = array<i32>} : memref<1x128xf32, #tpu.memory_space<vmem>>, vector<1x128xf32>,
    %c0_i32_18 = arith.constant 0 : i32
    %26 = arith.cmpi eq, %arg1, %c0_i32_18 : i32
    %27 = arith.extui %26 : i1 to i32
    %c0_i32_19 = arith.constant 0 : i32
    %28 = arith.cmpi ne, %27, %c0_i32_19 : i32
    scf.if %28 {
      %c0_20 = arith.constant 0 : index
      %c0_21 = arith.constant 0 : index
      %29 = vector.load %arg9[%c0_20, %c0_21] : memref<1x128xf32, #tpu.memory_space<vmem>>, vector<1x128xf32>
      %c0_22 = arith.constant 0 : index
      %30 = memref.load %arg7[%c0_22] : memref<1xf32, #tpu.memory_space<smem>>
      %31 = vector.broadcast %30 : f32 to vector<1x128xf32>
      %32 = arith.addf %29, %31 : vector<1x128xf32>
      %c0_23 = arith.constant 0 : index
      %c0_24 = arith.constant 0 : index
      %33 = vector.load %arg8[%c0_23, %c0_24] : memref<1x128xf32, #tpu.memory_space<vmem>>, vector<1x128xf32>
      tpu.vector_store %arg8[%c0_23, %c0_24], %32 {strides = array<i32>} : memref<1x128xf32, #tpu.memory_space<vmem>>, vector<1x128xf32>,
    } else {
    }
    return
  }
  func.func @transform_0(%arg0: i32, %arg1: i32) -> (i32, i32) {
    %c0_i32 = arith.constant 0 : i32
    %c0_i32_0 = arith.constant 0 : i32
    return %arg1, %c0_i32 : i32, i32
  }
  func.func @transform_1(%arg0: i32, %arg1: i32) -> (i32, i32) {
    %c0_i32 = arith.constant 0 : i32
    %c0_i32_0 = arith.constant 0 : i32
    return %arg0, %c0_i32 : i32, i32
  }
  func.func @transform_2(%arg0: i32, %arg1: i32) -> (i32, i32) {
    %c0_i32 = arith.constant 0 : i32
    %c0_i32_0 = arith.constant 0 : i32
    return %c0_i32, %arg1 : i32, i32
  }
  func.func @transform_3(%arg0: i32, %arg1: i32) -> (i32, i32) {
    %c0_i32 = arith.constant 0 : i32
    %c0_i32_0 = arith.constant 0 : i32
    return %arg1, %c0_i32 : i32, i32
  }
  func.func @transform_4(%arg0: i32, %arg1: i32) -> (i32, i32) {
    %c0_i32 = arith.constant 0 : i32
    %c0_i32_0 = arith.constant 0 : i32
    return %c0_i32, %arg0 : i32, i32
  }
  func.func @transform_5(%arg0: i32, %arg1: i32) -> i32 {
    %c0_i32 = arith.constant 0 : i32
    %c0_i32_0 = arith.constant 0 : i32
    return %c0_i32 : i32
  }
  func.func @transform_6(%arg0: i32, %arg1: i32) -> (i32, i32) {
    %c0_i32 = arith.constant 0 : i32
    %c0_i32_0 = arith.constant 0 : i32
    return %c0_i32, %arg0 : i32, i32
  }
}

</mosaic_0001>

<llo_original>
// kernel: tpu_custom_call.1
$region0: #{tpu_custom_call.1}
  #allocation0 [shape = 'u32[]', space=smem, size = 0x4, offset = 0x4, fixed_abs, tag = 'smem constant byte address 0x4 - core index']
  #allocation1 [shape = 'u32[144,128]{1,0:T(1,128)}', space=vmem, size = 0x12000, scoped, tag = 'internal scratch']
  #allocation2 [shape = 'f32[1,128]{1,0:T(1,128)}', space=vmem, size = 0x200, scoped, tag = 'scratch operand']
  #allocation3 [shape = 'f32[1]{0:T(128)S(6)}', space=smem, size = 0x200, scoped, tag = 'scoped memory for tpu_custom_call.1']
  %s0 = inlined_call_operand.vmem [shape: bf16[128,128], index: 0, kind: input, shape index: {}]
  %s1 = inlined_call_operand.vmem [shape: bf16[128,128], index: 1, kind: input, shape index: {}]
  %s2 = inlined_call_operand.vmem [shape: f32[1,128], index: 2, kind: input, shape index: {}]
  %s3 = inlined_call_operand.vmem [shape: f32[128,1], index: 3, kind: input, shape index: {}]
  %s4 = inlined_call_operand.vmem [shape: f32[1,128], index: 4, kind: input, shape index: {}]
  %s5 = inlined_call_operand.<no memory space> [shape: f32[1], index: 5, kind: input, shape index: {}]
  %s6 = inlined_call_operand.hbm [shape: f32[1,128], index: 6, kind: output, shape index: {}]
  %s7 = sld [smem:[#allocation0]]
  $region42: #{tpu_custom_call.1} parent=0
    _
  %s9 = ssub.s32 1, %s7
  %s10 = scalar_select 0, %s9, %s7
  %11 = sst [smem:[#allocation3]] %s5
  $region1: #{tpu_custom_call.1} parent=0
    #allocation4 [shape = 'u8[512]{0}', space=vmem, size = 0x400, scoped, tag = 'output window, operand 0, single buffered']
    #allocation5 [shape = 's32[1]{0}', space=sflag, size = 0x4, scoped, tag = 'scoped memory for tpu_custom_call.1']
    %12 = vsyncpa [#allocation5], 0
    // Predicated region
    $region2: #{tpu_custom_call.1} parent=1 // pred_check
      _
    $region3: #{tpu_custom_call.1} parent=1 // pred_check_branch
      %14 = sbr.rel (0) target = $region5
    $region4: #{tpu_custom_call.1} parent=1 // pred_region
      _
    $region5: #{tpu_custom_call.1} parent=1 // pred_fallthru
      _
    // Predicated region
    $region6: #{tpu_custom_call.1} parent=1 // pred_check
      _
    $region7: #{tpu_custom_call.1} parent=1 // pred_check_branch
      %16 = sbr.rel (0) target = $region9
    $region8: #{tpu_custom_call.1} parent=1 // pred_region
      _
    $region9: #{tpu_custom_call.1} parent=1 // pred_fallthru
      _
    // Predicated region
    $region10: #{tpu_custom_call.1} parent=1 // pred_check
      _
    $region11: #{tpu_custom_call.1} parent=1 // pred_check_branch
      %18 = sbr.rel (0) target = $region13
    $region12: #{tpu_custom_call.1} parent=1 // pred_region
      _
    $region13: #{tpu_custom_call.1} parent=1 // pred_fallthru
      _
    // Predicated region
    $region14: #{tpu_custom_call.1} parent=1 // pred_check
      _
    $region15: #{tpu_custom_call.1} parent=1 // pred_check_branch
      %20 = sbr.rel (0) target = $region17
    $region16: #{tpu_custom_call.1} parent=1 // pred_region
      _
    $region17: #{tpu_custom_call.1} parent=1 // pred_fallthru
      _
    // Predicated region
    $region18: #{tpu_custom_call.1} parent=1 // pred_check
      _
    $region19: #{tpu_custom_call.1} parent=1 // pred_check_branch
      %22 = sbr.rel (0) target = $region21
    $region20: #{tpu_custom_call.1} parent=1 // pred_region
      _
    $region21: #{tpu_custom_call.1} parent=1 // pred_fallthru
      _
    // Predicated region
    $region22: #{tpu_custom_call.1} parent=1 // pred_check
      _
    $region23: #{tpu_custom_call.1} parent=1 // pred_check_branch
      %24 = sbr.rel (0) target = $region25
    $region24: #{tpu_custom_call.1} parent=1 // pred_region
      _
    $region25: #{tpu_custom_call.1} parent=1 // pred_fallthru
      _
    %p26 = scmp.eq.s32.totalorder 0, 0
    // Predicated region
    $region26: #{tpu_custom_call.1} parent=1 // pred_check
      %p27 = pneg %p26
    $region27: #{tpu_custom_call.1} parent=1 // pred_check_branch
      %29 = sbr.rel (%p27) target = $region29
    $region28: #{tpu_custom_call.1} parent=1 // pred_region
      %30 = vst [vmem:[#allocation2] sm:$0x1] 0.0
    $region29: #{tpu_custom_call.1} parent=1 // pred_fallthru
      _
    %v31 = vld [vmem:[%s0] sm:$0xf]
    %v32 = vld [vmem:[%s0 + $0x4] sm:$0xf]
    %v33 = vld [vmem:[%s0 + $0x8] sm:$0xf]
    %v34 = vld [vmem:[%s0 + $0xc] sm:$0xf]
    %v35 = vld [vmem:[%s0 + $0x10] sm:$0xf]
    %v36 = vld [vmem:[%s0 + $0x14] sm:$0xf]
    %v37 = vld [vmem:[%s0 + $0x18] sm:$0xf]
    %v38 = vld [vmem:[%s0 + $0x1c] sm:$0xf]
    %v39 = vld [vmem:[%s0 + $0x20] sm:$0xf]
    %v40 = vld [vmem:[%s0 + $0x24] sm:$0xf]
    %v41 = vld [vmem:[%s0 + $0x28] sm:$0xf]
    %v42 = vld [vmem:[%s0 + $0x2c] sm:$0xf]
    %v43 = vld [vmem:[%s0 + $0x30] sm:$0xf]
    %v44 = vld [vmem:[%s0 + $0x34] sm:$0xf]
    %v45 = vld [vmem:[%s0 + $0x38] sm:$0xf]
    %v46 = vld [vmem:[%s0 + $0x3c] sm:$0xf]
    %v47 = vld [vmem:[%s1] sm:$0xf]
    %v48 = vld [vmem:[%s1 + $0x4] sm:$0xf]
    %v49 = vld [vmem:[%s1 + $0x8] sm:$0xf]
    %v50 = vld [vmem:[%s1 + $0xc] sm:$0xf]
    %v51 = vld [vmem:[%s1 + $0x10] sm:$0xf]
    %v52 = vld [vmem:[%s1 + $0x14] sm:$0xf]
    %v53 = vld [vmem:[%s1 + $0x18] sm:$0xf]
    %v54 = vld [vmem:[%s1 + $0x1c] sm:$0xf]
    %v55 = vld [vmem:[%s1 + $0x20] sm:$0xf]
    %v56 = vld [vmem:[%s1 + $0x24] sm:$0xf]
    %v57 = vld [vmem:[%s1 + $0x28] sm:$0xf]
    %v58 = vld [vmem:[%s1 + $0x2c] sm:$0xf]
    %v59 = vld [vmem:[%s1 + $0x30] sm:$0xf]
    %v60 = vld [vmem:[%s1 + $0x34] sm:$0xf]
    %v61 = vld [vmem:[%s1 + $0x38] sm:$0xf]
    %v62 = vld [vmem:[%s1 + $0x3c] sm:$0xf]
    %v79 = vunpack.c.l.b16 %v31
    %v80 = vunpack.c.l.b16 %v32
    %v81 = vunpack.c.l.b16 %v33
    %v82 = vunpack.c.l.b16 %v34
    %v83 = vunpack.c.l.b16 %v35
    %v84 = vunpack.c.l.b16 %v36
    %v85 = vunpack.c.l.b16 %v37
    %v86 = vunpack.c.l.b16 %v38
    %v87 = vunpack.c.l.b16 %v39
    %v88 = vunpack.c.l.b16 %v40
    %v89 = vunpack.c.l.b16 %v41
    %v90 = vunpack.c.l.b16 %v42
    %v91 = vunpack.c.l.b16 %v43
    %v92 = vunpack.c.l.b16 %v44
    %v93 = vunpack.c.l.b16 %v45
    %v94 = vunpack.c.l.b16 %v46
    %v95 = vpack.c.b16 %v80, %v79
    %v96 = vpack.c.b16 %v82, %v81
    %v97 = vpack.c.b16 %v84, %v83
    %v98 = vpack.c.b16 %v86, %v85
    %v99 = vpack.c.b16 %v88, %v87
    %v100 = vpack.c.b16 %v90, %v89
    %v101 = vpack.c.b16 %v92, %v91
    %v102 = vpack.c.b16 %v94, %v93
    %v127 = vunpack.c.l.b16 %v47
    %v128 = vunpack.c.l.b16 %v48
    %v129 = vunpack.c.l.b16 %v49
    %v130 = vunpack.c.l.b16 %v50
    %v131 = vunpack.c.l.b16 %v51
    %v132 = vunpack.c.l.b16 %v52
    %v133 = vunpack.c.l.b16 %v53
    %v134 = vunpack.c.l.b16 %v54
    %v135 = vunpack.c.l.b16 %v55
    %v136 = vunpack.c.l.b16 %v56
    %v137 = vunpack.c.l.b16 %v57
    %v138 = vunpack.c.l.b16 %v58
    %v139 = vunpack.c.l.b16 %v59
    %v140 = vunpack.c.l.b16 %v60
    %v141 = vunpack.c.l.b16 %v61
    %v142 = vunpack.c.l.b16 %v62
    %v143 = vpack.c.b16 %v128, %v127
    %v144 = vpack.c.b16 %v130, %v129
    %v145 = vpack.c.b16 %v132, %v131
    %v146 = vpack.c.b16 %v134, %v133
    %v147 = vpack.c.b16 %v136, %v135
    %v148 = vpack.c.b16 %v138, %v137
    %v149 = vpack.c.b16 %v140, %v139
    %v150 = vpack.c.b16 %v142, %v141
    %159 = vmatprep.subr.bf16.mxu0 0
    %160 = vmatpush1.bf16.xpose.msra.mxu0 %v143
    %161 = vmatprep.subr.bf16.mxu0 0
    %162 = vmatpush1.bf16.xpose.msra.mxu0 %v144
    %163 = vmatprep.subr.bf16.mxu0 0
    %164 = vmatpush1.bf16.xpose.msra.mxu0 %v145
    %165 = vmatprep.subr.bf16.mxu0 0
    %166 = vmatpush1.bf16.xpose.msra.mxu0 %v146
    %167 = vmatprep.subr.bf16.mxu0 0
    %168 = vmatpush1.bf16.xpose.msra.mxu0 %v147
    %169 = vmatprep.subr.bf16.mxu0 0
    %170 = vmatpush1.bf16.xpose.msra.mxu0 %v148
    %171 = vmatprep.subr.bf16.mxu0 0
    %172 = vmatpush1.bf16.xpose.msra.mxu0 %v149
    %173 = vmatprep.subr.bf16.mxu0 0
    %174 = vmatpush1.bf16.xpose.msra.mxu0 %v150
    %175 = vmatprep.subr.bf16.mxu0 0
    %176 = vmatpush1.bf16.xpose.msra.mxu0 0
    %177 = vmatprep.subr.bf16.mxu0 0
    %178 = vmatpush1.bf16.xpose.msra.mxu0 0
    %179 = vmatprep.subr.bf16.mxu0 0
    %180 = vmatpush1.bf16.xpose.msra.mxu0 0
    %181 = vmatprep.subr.bf16.mxu0 0
    %182 = vmatpush1.bf16.xpose.msra.mxu0 0
    %183 = vmatprep.subr.bf16.mxu0 0
    %184 = vmatpush1.bf16.xpose.msra.mxu0 0
    %185 = vmatprep.subr.bf16.mxu0 0
    %186 = vmatpush1.bf16.xpose.msra.mxu0 0
    %187 = vmatprep.subr.bf16.mxu0 0
    %188 = vmatpush1.bf16.xpose.msra.mxu0 0
    %189 = vmatprep.subr.bf16.mxu0 0
    %190 = vmatpush1.bf16.xpose.msra.mxu0 0
    %191 = vmatprep.mubr.bf16.mxu0 0
    %192 = vmatmul.mubr.bf16.gmra.mrb[0].mxu0 %v95
    %v193 = vpop.f32.mrb[0].mxu0
    %v194 = vadd.f32 0.0, %v193
    %v195 = vpop.f32.mrb[0].mxu0
    %v196 = vpop.f32.mrb[0].mxu0
    %v197 = vadd.f32 0.0, %v196
    %v198 = vpop.f32.mrb[0].mxu0
    %199 = vmatprep.mubr.bf16.mxu0 0
    %200 = vmatmul.mubr.bf16.gmra.mrb[0].mxu0 %v96
    %v201 = vpop.f32.mrb[0].mxu0
    %v202 = vadd.f32 0.0, %v201
    %v203 = vpop.f32.mrb[0].mxu0
    %v204 = vpop.f32.mrb[0].mxu0
    %v205 = vadd.f32 0.0, %v204
    %v206 = vpop.f32.mrb[0].mxu0
    %207 = vmatprep.mubr.bf16.mxu0 0
    %208 = vmatmul.mubr.bf16.gmra.mrb[0].mxu0 %v97
    %v209 = vpop.f32.mrb[0].mxu0
    %v210 = vadd.f32 0.0, %v209
    %v211 = vpop.f32.mrb[0].mxu0
    %v212 = vpop.f32.mrb[0].mxu0
    %v213 = vadd.f32 0.0, %v212
    %v214 = vpop.f32.mrb[0].mxu0
    %215 = vmatprep.mubr.bf16.mxu0 0
    %216 = vmatmul.mubr.bf16.gmra.mrb[0].mxu0 %v98
    %v217 = vpop.f32.mrb[0].mxu0
    %v218 = vadd.f32 0.0, %v217
    %v219 = vpop.f32.mrb[0].mxu0
    %v220 = vpop.f32.mrb[0].mxu0
    %v221 = vadd.f32 0.0, %v220
    %v222 = vpop.f32.mrb[0].mxu0
    %223 = vmatprep.mubr.bf16.mxu0 0
    %224 = vmatmul.mubr.bf16.gmra.mrb[0].mxu0 %v99
    %v225 = vpop.f32.mrb[0].mxu0
    %v226 = vadd.f32 0.0, %v225
    %v227 = vpop.f32.mrb[0].mxu0
    %v228 = vpop.f32.mrb[0].mxu0
    %v229 = vadd.f32 0.0, %v228
    %v230 = vpop.f32.mrb[0].mxu0
    %231 = vmatprep.mubr.bf16.mxu0 0
    %232 = vmatmul.mubr.bf16.gmra.mrb[0].mxu0 %v100
    %v233 = vpop.f32.mrb[0].mxu0
    %v234 = vadd.f32 0.0, %v233
    %v235 = vpop.f32.mrb[0].mxu0
    %v236 = vpop.f32.mrb[0].mxu0
    %v237 = vadd.f32 0.0, %v236
    %v238 = vpop.f32.mrb[0].mxu0
    %239 = vmatprep.mubr.bf16.mxu0 0
    %240 = vmatmul.mubr.bf16.gmra.mrb[0].mxu0 %v101
    %v241 = vpop.f32.mrb[0].mxu0
    %v242 = vadd.f32 0.0, %v241
    %v243 = vpop.f32.mrb[0].mxu0
    %v244 = vpop.f32.mrb[0].mxu0
    %v245 = vadd.f32 0.0, %v244
    %v246 = vpop.f32.mrb[0].mxu0
    %247 = vmatprep.mubr.bf16.mxu0 0
    %248 = vmatmul.mubr.bf16.gmra.mrb[0].mxu0 %v102
    %v249 = vpop.f32.mrb[0].mxu0
    %v250 = vadd.f32 0.0, %v249
    %v251 = vpop.f32.mrb[0].mxu0
    %v252 = vpop.f32.mrb[0].mxu0
    %v253 = vadd.f32 0.0, %v252
    %v254 = vpop.f32.mrb[0].mxu0
    %255 = vdwg.mxu0
    %v256 = vld [vmem:[%s3] sm:$0xff]
    %v257 = vld [vmem:[%s3 + $0x8] sm:$0xff]
    %v258 = vld [vmem:[%s3 + $0x10] sm:$0xff]
    %v259 = vld [vmem:[%s3 + $0x18] sm:$0xff]
    %v260 = vld [vmem:[%s3 + $0x20] sm:$0xff]
    %v261 = vld [vmem:[%s3 + $0x28] sm:$0xff]
    %v262 = vld [vmem:[%s3 + $0x30] sm:$0xff]
    %v263 = vld [vmem:[%s3 + $0x38] sm:$0xff]
    %v264 = vld [vmem:[%s3 + $0x40] sm:$0xff]
    %v265 = vld [vmem:[%s3 + $0x48] sm:$0xff]
    %v266 = vld [vmem:[%s3 + $0x50] sm:$0xff]
    %v267 = vld [vmem:[%s3 + $0x58] sm:$0xff]
    %v268 = vld [vmem:[%s3 + $0x60] sm:$0xff]
    %v269 = vld [vmem:[%s3 + $0x68] sm:$0xff]
    %v270 = vld [vmem:[%s3 + $0x70] sm:$0xff]
    %v271 = vld [vmem:[%s3 + $0x78] sm:$0xff]
    %v272 = vld [vmem:[%s4] sm:$0x1]
    %274 = vset.pattern.permute.xlu0 0
    %275 = vperm.xlu0 %274, %v256
    %v276 = vpop.permute.xlu0 %275
    %279 = vset.pattern.permute.xlu0 0
    %280 = vperm.xlu0 %279, %v257
    %v281 = vpop.permute.xlu0 %280
    %284 = vset.pattern.permute.xlu0 0
    %285 = vperm.xlu0 %284, %v258
    %v286 = vpop.permute.xlu0 %285
    %289 = vset.pattern.permute.xlu0 0
    %290 = vperm.xlu0 %289, %v259
    %v291 = vpop.permute.xlu0 %290
    %294 = vset.pattern.permute.xlu0 0
    %295 = vperm.xlu0 %294, %v260
    %v296 = vpop.permute.xlu0 %295
    %299 = vset.pattern.permute.xlu0 0
    %300 = vperm.xlu0 %299, %v261
    %v301 = vpop.permute.xlu0 %300
    %304 = vset.pattern.permute.xlu0 0
    %305 = vperm.xlu0 %304, %v262
    %v306 = vpop.permute.xlu0 %305
    %309 = vset.pattern.permute.xlu0 0
    %310 = vperm.xlu0 %309, %v263
    %v311 = vpop.permute.xlu0 %310
    %314 = vset.pattern.permute.xlu0 0
    %315 = vperm.xlu0 %314, %v264
    %v316 = vpop.permute.xlu0 %315
    %319 = vset.pattern.permute.xlu0 0
    %320 = vperm.xlu0 %319, %v265
    %v321 = vpop.permute.xlu0 %320
    %324 = vset.pattern.permute.xlu0 0
    %325 = vperm.xlu0 %324, %v266
    %v326 = vpop.permute.xlu0 %325
    %329 = vset.pattern.permute.xlu0 0
    %330 = vperm.xlu0 %329, %v267
    %v331 = vpop.permute.xlu0 %330
    %334 = vset.pattern.permute.xlu0 0
    %335 = vperm.xlu0 %334, %v268
    %v336 = vpop.permute.xlu0 %335
    %339 = vset.pattern.permute.xlu0 0
    %340 = vperm.xlu0 %339, %v269
    %v341 = vpop.permute.xlu0 %340
    %344 = vset.pattern.permute.xlu0 0
    %345 = vperm.xlu0 %344, %v270
    %v346 = vpop.permute.xlu0 %345
    %349 = vset.pattern.permute.xlu0 0
    %350 = vperm.xlu0 %349, %v271
    %v351 = vpop.permute.xlu0 %350
    %v354 = vlaneseq
    %v355 = vshrl.u32 %v354, 7
    %v356 = vsub.s32 0, %v355
    %v357 = vrot.slane %v272, %v356
    %v359 = vadd.f32 %v276, %v357
    %v360 = vadd.f32 %v281, %v357
    %v361 = vadd.f32 %v286, %v357
    %v362 = vadd.f32 %v291, %v357
    %v363 = vadd.f32 %v296, %v357
    %v364 = vadd.f32 %v301, %v357
    %v365 = vadd.f32 %v306, %v357
    %v366 = vadd.f32 %v311, %v357
    %v367 = vadd.f32 %v316, %v357
    %v368 = vadd.f32 %v321, %v357
    %v369 = vadd.f32 %v326, %v357
    %v370 = vadd.f32 %v331, %v357
    %v371 = vadd.f32 %v336, %v357
    %v372 = vadd.f32 %v341, %v357
    %v373 = vadd.f32 %v346, %v357
    %v374 = vadd.f32 %v351, %v357
    %v375 = vmul.f32 %v194, 2.0
    %v376 = vmul.f32 %v197, 2.0
    %v377 = vmul.f32 %v202, 2.0
    %v378 = vmul.f32 %v205, 2.0
    %v379 = vmul.f32 %v210, 2.0
    %v380 = vmul.f32 %v213, 2.0
    %v381 = vmul.f32 %v218, 2.0
    %v382 = vmul.f32 %v221, 2.0
    %v383 = vmul.f32 %v226, 2.0
    %v384 = vmul.f32 %v229, 2.0
    %v385 = vmul.f32 %v234, 2.0
    %v386 = vmul.f32 %v237, 2.0
    %v387 = vmul.f32 %v242, 2.0
    %v388 = vmul.f32 %v245, 2.0
    %v389 = vmul.f32 %v250, 2.0
    %v390 = vmul.f32 %v253, 2.0
    %v391 = vsub.f32 %v359, %v375
    %v392 = vsub.f32 %v360, %v376
    %v393 = vsub.f32 %v361, %v377
    %v394 = vsub.f32 %v362, %v378
    %v395 = vsub.f32 %v363, %v379
    %v396 = vsub.f32 %v364, %v380
    %v397 = vsub.f32 %v365, %v381
    %v398 = vsub.f32 %v366, %v382
    %v399 = vsub.f32 %v367, %v383
    %v400 = vsub.f32 %v368, %v384
    %v401 = vsub.f32 %v369, %v385
    %v402 = vsub.f32 %v370, %v386
    %v403 = vsub.f32 %v371, %v387
    %v404 = vsub.f32 %v372, %v388
    %v405 = vsub.f32 %v373, %v389
    %v406 = vsub.f32 %v374, %v390
    %v407 = vmax.f32 %v391, 0.0
    %v408 = vmax.f32 %v392, 0.0
    %v409 = vmax.f32 %v393, 0.0
    %v410 = vmax.f32 %v394, 0.0
    %v411 = vmax.f32 %v395, 0.0
    %v412 = vmax.f32 %v396, 0.0
    %v413 = vmax.f32 %v397, 0.0
    %v414 = vmax.f32 %v398, 0.0
    %v415 = vmax.f32 %v399, 0.0
    %v416 = vmax.f32 %v400, 0.0
    %v417 = vmax.f32 %v401, 0.0
    %v418 = vmax.f32 %v402, 0.0
    %v419 = vmax.f32 %v403, 0.0
    %v420 = vmax.f32 %v404, 0.0
    %v421 = vmax.f32 %v405, 0.0
    %v422 = vmax.f32 %v406, 0.0
    %v423 = vmul.f32 %v407, -0.05
    %v424 = vmul.f32 %v408, -0.05
    %v425 = vmul.f32 %v409, -0.05
    %v426 = vmul.f32 %v410, -0.05
    %v427 = vmul.f32 %v411, -0.05
    %v428 = vmul.f32 %v412, -0.05
    %v429 = vmul.f32 %v413, -0.05
    %v430 = vmul.f32 %v414, -0.05
    %v431 = vmul.f32 %v415, -0.05
    %v432 = vmul.f32 %v416, -0.05
    %v433 = vmul.f32 %v417, -0.05
    %v434 = vmul.f32 %v418, -0.05
    %v435 = vmul.f32 %v419, -0.05
    %v436 = vmul.f32 %v420, -0.05
    %v437 = vmul.f32 %v421, -0.05
    %v438 = vmul.f32 %v422, -0.05
    %v439 = vpack.c.bf16 %v424, %v423
    %v440 = vpack.c.bf16 %v426, %v425
    %v441 = vpack.c.bf16 %v428, %v427
    %v442 = vpack.c.bf16 %v430, %v429
    %v443 = vpack.c.bf16 %v432, %v431
    %v444 = vpack.c.bf16 %v434, %v433
    %v445 = vpack.c.bf16 %v436, %v435
    %v446 = vpack.c.bf16 %v438, %v437
    %v448 = vmul.bf16 %v439, 1069105081
    %v449 = vpow.bf16.pop %v448
    %v451 = vmul.bf16 %v440, 1069105081
    %v452 = vpow.bf16.pop %v451
    %v454 = vmul.bf16 %v441, 1069105081
    %v455 = vpow.bf16.pop %v454
    %v457 = vmul.bf16 %v442, 1069105081
    %v458 = vpow.bf16.pop %v457
    %v460 = vmul.bf16 %v443, 1069105081
    %v461 = vpow.bf16.pop %v460
    %v463 = vmul.bf16 %v444, 1069105081
    %v464 = vpow.bf16.pop %v463
    %v466 = vmul.bf16 %v445, 1069105081
    %v467 = vpow.bf16.pop %v466
    %v469 = vmul.bf16 %v446, 1069105081
    %v470 = vpow.bf16.pop %v469
    %v471 = vld [vmem:[#allocation2] sm:$0x1]
    %v472 = vld [vmem:[%s2] sm:$0x1]
    %v473 = vpack.c.bf16 %v472, %v472
    %474 = vmatprep.subr.bf16.mxu0 0
    %475 = vmatpush1.bf16.msra.mxu0 %v449
    %476 = vmatprep.subr.bf16.mxu0 0
    %477 = vmatpush1.bf16.msra.mxu0 %v452
    %478 = vmatprep.subr.bf16.mxu0 0
    %479 = vmatpush1.bf16.msra.mxu0 %v455
    %480 = vmatprep.subr.bf16.mxu0 0
    %481 = vmatpush1.bf16.msra.mxu0 %v458
    %482 = vmatprep.subr.bf16.mxu0 0
    %483 = vmatpush1.bf16.msra.mxu0 %v461
    %484 = vmatprep.subr.bf16.mxu0 0
    %485 = vmatpush1.bf16.msra.mxu0 %v464
    %486 = vmatprep.subr.bf16.mxu0 0
    %487 = vmatpush1.bf16.msra.mxu0 %v467
    %488 = vmatprep.subr.bf16.mxu0 0
    %489 = vmatpush1.bf16.msra.mxu0 %v470
    %490 = vmatprep.subr.bf16.mxu0 0
    %491 = vmatpush1.bf16.msra.mxu0 0
    %492 = vmatprep.subr.bf16.mxu0 0
    %493 = vmatpush1.bf16.msra.mxu0 0
    %494 = vmatprep.subr.bf16.mxu0 0
    %495 = vmatpush1.bf16.msra.mxu0 0
    %496 = vmatprep.subr.bf16.mxu0 0
    %497 = vmatpush1.bf16.msra.mxu0 0
    %498 = vmatprep.subr.bf16.mxu0 0
    %499 = vmatpush1.bf16.msra.mxu0 0
    %500 = vmatprep.subr.bf16.mxu0 0
    %501 = vmatpush1.bf16.msra.mxu0 0
    %502 = vmatprep.subr.bf16.mxu0 0
    %503 = vmatpush1.bf16.msra.mxu0 0
    %504 = vmatprep.subr.bf16.mxu0 0
    %505 = vmatpush1.bf16.msra.mxu0 0
    %506 = vmatprep.mubr.bf16.mxu0 0
    %507 = vmatmul.mubr.bf16.gmra.mrb[0].mxu0 %v473
    %v508 = vpop.f32.mrb[0].mxu0
    %v509 = vadd.f32 0.0, %v508
    %v510 = vpop.f32.mrb[0].mxu0
    %v511 = vpop.f32.mrb[0].mxu0
    %v512 = vpop.f32.mrb[0].mxu0
    %513 = vdwg.mxu0
    %v514 = vadd.f32 %v471, %v509
    %515 = vst [vmem:[#allocation2] sm:$0x1] %v514
    // Predicated region
    $region30: #{tpu_custom_call.1} parent=1 // pred_check
      %p516 = pneg %p26
    $region31: #{tpu_custom_call.1} parent=1 // pred_check_branch
      %518 = sbr.rel (%p516) target = $region33
    $region32: #{tpu_custom_call.1} parent=1 // pred_region
      %v519 = vld [vmem:[#allocation2] sm:$0x1]
      %s520 = sld [smem:[#allocation3]]
      %v521 = vstv %s520
      %v522 = vadd.f32 %v519, %v521
      %523 = vst [vmem:[#allocation4] sm:$0x1] %v522
    $region33: #{tpu_custom_call.1} parent=1 // pred_fallthru
      _
    // Predicated region
    $region34: #{tpu_custom_call.1} parent=1 // pred_check
      _
    $region35: #{tpu_custom_call.1} parent=1 // pred_check_branch
      %525 = sbr.rel (0) target = $region37
    $region36: #{tpu_custom_call.1} parent=1 // pred_region
      %s527 = ssub.s32 16, 16
      %528 = vsyncadd [#allocation5], %s527
      %s530 = sshll.u32 [#allocation4], 4
      %s531 = int_to_ptr.vmem [resolvable:$true] %s530
      %533 = dma.vmem_to_hbm [thread:$0]  %s531, 16, %s6, [#allocation5]
    $region37: #{tpu_custom_call.1} parent=1 // pred_fallthru
      _
    // Predicated region
    $region38: #{tpu_custom_call.1} parent=1 // pred_check
      _
    $region39: #{tpu_custom_call.1} parent=1 // pred_check_branch
      %535 = sbr.rel (0) target = $region41
    $region40: #{tpu_custom_call.1} parent=1 // pred_region
      %536 = dma.done [#allocation5], 16
    $region41: #{tpu_custom_call.1} parent=1 // pred_fallthru
      _
    %537 = vsyncpa [#allocation5], 1

</llo_original>
